<compile_context>
chip_gen: v7x
topology: tpu7x:2x2x1
jax: 0.10.0
libtpu: 0.0.40
codegen_flags: <defaults>
</compile_context>

<pallas_src>
import functools

import jax
import jax.numpy as jnp
from jax import lax
from jax.experimental import pallas as pl
from jax.experimental.pallas import tpu as pltpu

_C1 = 0.01 ** 2
_C2 = 0.03 ** 2
_LIVE_F32_INTERMEDIATES = 12   # rough count of live (tile,H,W) f32 temps


def _ssim_kernel(x_ref, y_ref, o_ref, *, c1x81, c2x81, convert_range):
    # Cast in-register (inputs arrive in their native dtype).
    x = x_ref[...].astype(jnp.float32)          # (tbc, H, W)
    y = y_ref[...].astype(jnp.float32)
    if convert_range:                           # [-1,1] -> [0,1], fused
        x = (x + 1.0) * 0.5
        y = (y + 1.0) * 0.5

    H = x.shape[1]
    W = x.shape[2]

    # Reflected 3-tap sums, shape-preserving: all intermediates stay W lanes
    # wide (no W+2 padded copies).  ReflectionPad2d(1) + valid 3x3 means the
    # boundary tap simply re-reads index 1 / index N-2.
    def hsum3(a):
        left = jnp.concatenate([a[:, :, 1:2], a[:, :, :W - 1]], axis=2)
        right = jnp.concatenate([a[:, :, 1:], a[:, :, W - 2:W - 1]], axis=2)
        return left + a + right

    def vsum3(a):
        up = jnp.concatenate([a[:, 1:2, :], a[:, :H - 1, :]], axis=1)
        down = jnp.concatenate([a[:, 1:, :], a[:, H - 2:H - 1, :]], axis=1)
        return up + a + down

    def box9(a):                                # raw 3x3 sum (no 1/9)
        return vsum3(hsum3(a))

    sx = box9(x)
    sy = box9(y)
    sxx = box9(x * x)
    syy = box9(y * y)
    sxy = box9(x * y)

    # With S = 9*mu, multiplying every numerator/denominator factor by 81
    # leaves the SSIM ratio unchanged; fold 1/9 into the constants.
    a_ = sx * sy
    sx2 = sx * sx
    sy2 = sy * sy
    ssim_n = (2.0 * a_ + c1x81) * (18.0 * sxy - 2.0 * a_ + c2x81)
    ssim_d = (sx2 + sy2 + c1x81) * (9.0 * (sxx + syy) - sx2 - sy2 + c2x81)
    ratio = ssim_n * pl.reciprocal(ssim_d, approx=True)    # EUP reciprocal
    # 1 - clip((1 - r)/2, 0, 1)  ==  clip((1 + r)/2, 0, 1)
    o_ref[...] = jnp.clip((ratio + 1.0) * 0.5, 0.0, 1.0).astype(o_ref.dtype)


def _default_vmem_limit():
    """~75% of physical VMEM: ~96 MiB on v5e/v6e, ~48 MiB on v7x."""
    try:
        info = pltpu.get_tpu_info()
        cap = getattr(info, "vmem_capacity_bytes", None)
        if cap:
            return int(cap) * 3 // 4
    except Exception:
        pass
    return 64 * 1024 * 1024


def _choose_tile_bc(bc, h, w, in_itemsize, out_itemsize, vmem_limit_bytes):
    """Largest bc-tile whose double-buffered I/O + live f32 temps fit VMEM."""
    per_px = (2 * 2 * in_itemsize) + (2 * out_itemsize) \
        + _LIVE_F32_INTERMEDIATES * 4
    per_img = h * w * per_px
    budget = int(vmem_limit_bytes * 0.9)
    tile = max(1, budget // per_img)
    if bc >= 2:                 # keep >=2 grid steps (v7x has 2 TensorCores)
        tile = min(tile, pl.cdiv(bc, 2))
    return int(min(tile, bc))


def ssim_loss(x, y, *, convert_range=False, block_bc=None):
    """SSIMLoss.forward: per-pixel map of shape (B, C, H, W)."""
    assert x.shape == y.shape and x.ndim == 4
    B, C, H, W = x.shape
    assert H >= 2 and W >= 2, "ReflectionPad2d(1) needs spatial dims >= 2"
    bc = B * C
    out_dtype = x.dtype
    x3 = x.reshape(bc, H, W)                    # free reshape, no cast
    y3 = y.reshape(bc, H, W)

    vmem_limit = _default_vmem_limit()
    if block_bc is None:
        tile = _choose_tile_bc(bc, H, W, x.dtype.itemsize,
                               jnp.dtype(out_dtype).itemsize, vmem_limit)
    else:
        tile = int(block_bc)
    tile = max(1, min(tile, bc))
    grid = (pl.cdiv(bc, tile),)   # tile need not divide bc; last block masked

    # TODO(synk): for a single image whose working set exceeds VMEM (large
    # H*W, esp. v7x's 64 MiB), add H-tiling with a 1-row halo.
    # TODO(synk): for W << 128, pack k images per lane tile (block
    # (tile/k, H, k*W) + cross-image column masks) to fill the 128 lanes.

    kern = functools.partial(_ssim_kernel, c1x81=_C1 * 81.0, c2x81=_C2 * 81.0,
                             convert_range=convert_range)
    spec = pl.BlockSpec((tile, H, W), lambda i: (i, 0, 0))
    out = pl.pallas_call(
        kern,
        out_shape=jax.ShapeDtypeStruct((bc, H, W), out_dtype),
        grid=grid,
        in_specs=[spec, spec],
        out_specs=spec,
        compiler_params=pltpu.CompilerParams(
            dimension_semantics=("parallel",),
            vmem_limit_bytes=vmem_limit),
    )(x3, y3)
    return out.reshape(B, C, H, W)


# ----------------------------- pure-JAX reference ----------------------------
def _ssim_loss_ref(x, y, convert_range=False):
    x = x.astype(jnp.float32)
    y = y.astype(jnp.float32)
    if convert_range:
        x = (x + 1.0) / 2.0
        y = (y + 1.0) / 2.0
    pad = ((0, 0), (0, 0), (1, 1), (1, 1))
    xp = jnp.pad(x, pad, mode="reflect")
    yp = jnp.pad(y, pad, mode="reflect")

    def pool(a):
        return lax.reduce_window(a, 0.0, lax.add,
                                 (1, 1, 3, 3), (1, 1, 1, 1), "VALID") / 9.0

    mu_x, mu_y = pool(xp), pool(yp)
    sigma_x = pool(xp * xp) - mu_x ** 2
    sigma_y = pool(yp * yp) - mu_y ** 2
    sigma_xy = pool(xp * yp) - mu_x * mu_y
    n = (2.0 * mu_x * mu_y + _C1) * (2.0 * sigma_xy + _C2)
    d = (mu_x ** 2 + mu_y ** 2 + _C1) * (sigma_x + sigma_y + _C2)
    return 1.0 - jnp.clip((1.0 - n / d) / 2.0, 0.0, 1.0)


if __name__ == "__main__":
    key = jax.random.PRNGKey(0)
    kx, ky = jax.random.split(key)
    B, C, H, W = 2, 4, 16, 16
    x = jax.random.uniform(kx, (B, C, H, W), dtype=jnp.float32)   # [0, 1]
    y = jax.random.uniform(ky, (B, C, H, W), dtype=jnp.float32)

    TOL = 3e-3   # approx reciprocal (EUP) vs exact division budget

    loss_fn = jax.jit(functools.partial(ssim_loss, convert_range=False))
    out = jax.block_until_ready(loss_fn(x, y))
    assert out.shape == (B, C, H, W)
    assert bool(jnp.all(jnp.isfinite(out)))

    ref = _ssim_loss_ref(x, y)
    err = float(jnp.max(jnp.abs(out - ref)))
    assert err < TOL, f"max abs err vs reference: {err}"

    # SSIM map of identical images is 0 -> loss map is exactly 1 everywhere.
    self_out = jax.block_until_ready(loss_fn(x, x))
    assert float(jnp.max(jnp.abs(self_out - 1.0))) < TOL

    # Exercise a multi-step grid with a NON-divisor tile (bc=8, tile=3 ->
    # grid=(3,), last block partially out of bounds / masked).
    out_tiled = jax.block_until_ready(
        jax.jit(functools.partial(ssim_loss, block_bc=3))(x, y))
    assert float(jnp.max(jnp.abs(out_tiled - ref))) < TOL

    # convert_range path ([-1,1] -> [0,1] fused in-kernel).
    xm = x * 2.0 - 1.0
    ym = y * 2.0 - 1.0
    out_cr = jax.block_until_ready(
        jax.jit(functools.partial(ssim_loss, convert_range=True))(xm, ym))
    err_cr = float(jnp.max(jnp.abs(out_cr - _ssim_loss_ref(xm, ym, True))))
    assert err_cr < TOL, f"convert_range max abs err: {err_cr}"

    print("KERNEL_OK")
</pallas_src>

<mosaic_0001>
module attributes {stable_mosaic.version = 11 : i64} {
  func.func @_ssim_kernel(%arg0: i32, %arg1: memref<4x16x16xf32, #tpu.memory_space<vmem>>, %arg2: memref<4x16x16xf32, #tpu.memory_space<vmem>>, %arg3: memref<4x16x16xf32, #tpu.memory_space<vmem>>) attributes {dimension_semantics = [#tpu.dimension_semantics<parallel>], iteration_bounds = array<i64: 2>, scalar_prefetch = 0 : i64, scratch_operands = 0 : i64, tpu.core_type = #tpu.core_type<tc>, window_params = [{transform_indices = @transform_0, window_bounds = array<i64: 4, 16, 16>}, {transform_indices = @transform_1, window_bounds = array<i64: 4, 16, 16>}, {transform_indices = @transform_2, window_bounds = array<i64: 4, 16, 16>}]} {
    %c0 = arith.constant 0 : index
    %c0_0 = arith.constant 0 : index
    %c0_1 = arith.constant 0 : index
    %0 = vector.load %arg1[%c0, %c0_0, %c0_1] : memref<4x16x16xf32, #tpu.memory_space<vmem>>, vector<4x16x16xf32>
    %c0_2 = arith.constant 0 : index
    %c0_3 = arith.constant 0 : index
    %c0_4 = arith.constant 0 : index
    %1 = vector.load %arg2[%c0_2, %c0_3, %c0_4] : memref<4x16x16xf32, #tpu.memory_space<vmem>>, vector<4x16x16xf32>
    %2 = vector.extract_strided_slice %0 {offsets = [0, 0, 1], sizes = [4, 16, 1], strides = [1, 1, 1]} : vector<4x16x16xf32> to vector<4x16x1xf32>
    %3 = vector.extract_strided_slice %0 {offsets = [0, 0, 0], sizes = [4, 16, 15], strides = [1, 1, 1]} : vector<4x16x16xf32> to vector<4x16x15xf32>
    %4 = tpu.concatenate %2, %3 in 2 : vector<4x16x1xf32>, vector<4x16x15xf32> -> vector<4x16x16xf32>
    %5 = vector.extract_strided_slice %0 {offsets = [0, 0, 1], sizes = [4, 16, 15], strides = [1, 1, 1]} : vector<4x16x16xf32> to vector<4x16x15xf32>
    %6 = vector.extract_strided_slice %0 {offsets = [0, 0, 14], sizes = [4, 16, 1], strides = [1, 1, 1]} : vector<4x16x16xf32> to vector<4x16x1xf32>
    %7 = tpu.concatenate %5, %6 in 2 : vector<4x16x15xf32>, vector<4x16x1xf32> -> vector<4x16x16xf32>
    %8 = arith.addf %4, %0 : vector<4x16x16xf32>
    %9 = arith.addf %8, %7 : vector<4x16x16xf32>
    %10 = vector.extract_strided_slice %9 {offsets = [0, 1, 0], sizes = [4, 1, 16], strides = [1, 1, 1]} : vector<4x16x16xf32> to vector<4x1x16xf32>
    %11 = vector.extract_strided_slice %9 {offsets = [0, 0, 0], sizes = [4, 15, 16], strides = [1, 1, 1]} : vector<4x16x16xf32> to vector<4x15x16xf32>
    %12 = tpu.concatenate %10, %11 in 1 : vector<4x1x16xf32>, vector<4x15x16xf32> -> vector<4x16x16xf32>
    %13 = vector.extract_strided_slice %9 {offsets = [0, 1, 0], sizes = [4, 15, 16], strides = [1, 1, 1]} : vector<4x16x16xf32> to vector<4x15x16xf32>
    %14 = vector.extract_strided_slice %9 {offsets = [0, 14, 0], sizes = [4, 1, 16], strides = [1, 1, 1]} : vector<4x16x16xf32> to vector<4x1x16xf32>
    %15 = tpu.concatenate %13, %14 in 1 : vector<4x15x16xf32>, vector<4x1x16xf32> -> vector<4x16x16xf32>
    %16 = arith.addf %12, %9 : vector<4x16x16xf32>
    %17 = arith.addf %16, %15 : vector<4x16x16xf32>
    %18 = vector.extract_strided_slice %1 {offsets = [0, 0, 1], sizes = [4, 16, 1], strides = [1, 1, 1]} : vector<4x16x16xf32> to vector<4x16x1xf32>
    %19 = vector.extract_strided_slice %1 {offsets = [0, 0, 0], sizes = [4, 16, 15], strides = [1, 1, 1]} : vector<4x16x16xf32> to vector<4x16x15xf32>
    %20 = tpu.concatenate %18, %19 in 2 : vector<4x16x1xf32>, vector<4x16x15xf32> -> vector<4x16x16xf32>
    %21 = vector.extract_strided_slice %1 {offsets = [0, 0, 1], sizes = [4, 16, 15], strides = [1, 1, 1]} : vector<4x16x16xf32> to vector<4x16x15xf32>
    %22 = vector.extract_strided_slice %1 {offsets = [0, 0, 14], sizes = [4, 16, 1], strides = [1, 1, 1]} : vector<4x16x16xf32> to vector<4x16x1xf32>
    %23 = tpu.concatenate %21, %22 in 2 : vector<4x16x15xf32>, vector<4x16x1xf32> -> vector<4x16x16xf32>
    %24 = arith.addf %20, %1 : vector<4x16x16xf32>
    %25 = arith.addf %24, %23 : vector<4x16x16xf32>
    %26 = vector.extract_strided_slice %25 {offsets = [0, 1, 0], sizes = [4, 1, 16], strides = [1, 1, 1]} : vector<4x16x16xf32> to vector<4x1x16xf32>
    %27 = vector.extract_strided_slice %25 {offsets = [0, 0, 0], sizes = [4, 15, 16], strides = [1, 1, 1]} : vector<4x16x16xf32> to vector<4x15x16xf32>
    %28 = tpu.concatenate %26, %27 in 1 : vector<4x1x16xf32>, vector<4x15x16xf32> -> vector<4x16x16xf32>
    %29 = vector.extract_strided_slice %25 {offsets = [0, 1, 0], sizes = [4, 15, 16], strides = [1, 1, 1]} : vector<4x16x16xf32> to vector<4x15x16xf32>
    %30 = vector.extract_strided_slice %25 {offsets = [0, 14, 0], sizes = [4, 1, 16], strides = [1, 1, 1]} : vector<4x16x16xf32> to vector<4x1x16xf32>
    %31 = tpu.concatenate %29, %30 in 1 : vector<4x15x16xf32>, vector<4x1x16xf32> -> vector<4x16x16xf32>
    %32 = arith.addf %28, %25 : vector<4x16x16xf32>
    %33 = arith.addf %32, %31 : vector<4x16x16xf32>
    %34 = arith.mulf %0, %0 : vector<4x16x16xf32>
    %35 = vector.extract_strided_slice %34 {offsets = [0, 0, 1], sizes = [4, 16, 1], strides = [1, 1, 1]} : vector<4x16x16xf32> to vector<4x16x1xf32>
    %36 = vector.extract_strided_slice %34 {offsets = [0, 0, 0], sizes = [4, 16, 15], strides = [1, 1, 1]} : vector<4x16x16xf32> to vector<4x16x15xf32>
    %37 = tpu.concatenate %35, %36 in 2 : vector<4x16x1xf32>, vector<4x16x15xf32> -> vector<4x16x16xf32>
    %38 = vector.extract_strided_slice %34 {offsets = [0, 0, 1], sizes = [4, 16, 15], strides = [1, 1, 1]} : vector<4x16x16xf32> to vector<4x16x15xf32>
    %39 = vector.extract_strided_slice %34 {offsets = [0, 0, 14], sizes = [4, 16, 1], strides = [1, 1, 1]} : vector<4x16x16xf32> to vector<4x16x1xf32>
    %40 = tpu.concatenate %38, %39 in 2 : vector<4x16x15xf32>, vector<4x16x1xf32> -> vector<4x16x16xf32>
    %41 = arith.addf %37, %34 : vector<4x16x16xf32>
    %42 = arith.addf %41, %40 : vector<4x16x16xf32>
    %43 = vector.extract_strided_slice %42 {offsets = [0, 1, 0], sizes = [4, 1, 16], strides = [1, 1, 1]} : vector<4x16x16xf32> to vector<4x1x16xf32>
    %44 = vector.extract_strided_slice %42 {offsets = [0, 0, 0], sizes = [4, 15, 16], strides = [1, 1, 1]} : vector<4x16x16xf32> to vector<4x15x16xf32>
    %45 = tpu.concatenate %43, %44 in 1 : vector<4x1x16xf32>, vector<4x15x16xf32> -> vector<4x16x16xf32>
    %46 = vector.extract_strided_slice %42 {offsets = [0, 1, 0], sizes = [4, 15, 16], strides = [1, 1, 1]} : vector<4x16x16xf32> to vector<4x15x16xf32>
    %47 = vector.extract_strided_slice %42 {offsets = [0, 14, 0], sizes = [4, 1, 16], strides = [1, 1, 1]} : vector<4x16x16xf32> to vector<4x1x16xf32>
    %48 = tpu.concatenate %46, %47 in 1 : vector<4x15x16xf32>, vector<4x1x16xf32> -> vector<4x16x16xf32>
    %49 = arith.addf %45, %42 : vector<4x16x16xf32>
    %50 = arith.addf %49, %48 : vector<4x16x16xf32>
    %51 = arith.mulf %1, %1 : vector<4x16x16xf32>
    %52 = vector.extract_strided_slice %51 {offsets = [0, 0, 1], sizes = [4, 16, 1], strides = [1, 1, 1]} : vector<4x16x16xf32> to vector<4x16x1xf32>
    %53 = vector.extract_strided_slice %51 {offsets = [0, 0, 0], sizes = [4, 16, 15], strides = [1, 1, 1]} : vector<4x16x16xf32> to vector<4x16x15xf32>
    %54 = tpu.concatenate %52, %53 in 2 : vector<4x16x1xf32>, vector<4x16x15xf32> -> vector<4x16x16xf32>
    %55 = vector.extract_strided_slice %51 {offsets = [0, 0, 1], sizes = [4, 16, 15], strides = [1, 1, 1]} : vector<4x16x16xf32> to vector<4x16x15xf32>
    %56 = vector.extract_strided_slice %51 {offsets = [0, 0, 14], sizes = [4, 16, 1], strides = [1, 1, 1]} : vector<4x16x16xf32> to vector<4x16x1xf32>
    %57 = tpu.concatenate %55, %56 in 2 : vector<4x16x15xf32>, vector<4x16x1xf32> -> vector<4x16x16xf32>
    %58 = arith.addf %54, %51 : vector<4x16x16xf32>
    %59 = arith.addf %58, %57 : vector<4x16x16xf32>
    %60 = vector.extract_strided_slice %59 {offsets = [0, 1, 0], sizes = [4, 1, 16], strides = [1, 1, 1]} : vector<4x16x16xf32> to vector<4x1x16xf32>
    %61 = vector.extract_strided_slice %59 {offsets = [0, 0, 0], sizes = [4, 15, 16], strides = [1, 1, 1]} : vector<4x16x16xf32> to vector<4x15x16xf32>
    %62 = tpu.concatenate %60, %61 in 1 : vector<4x1x16xf32>, vector<4x15x16xf32> -> vector<4x16x16xf32>
    %63 = vector.extract_strided_slice %59 {offsets = [0, 1, 0], sizes = [4, 15, 16], strides = [1, 1, 1]} : vector<4x16x16xf32> to vector<4x15x16xf32>
    %64 = vector.extract_strided_slice %59 {offsets = [0, 14, 0], sizes = [4, 1, 16], strides = [1, 1, 1]} : vector<4x16x16xf32> to vector<4x1x16xf32>
    %65 = tpu.concatenate %63, %64 in 1 : vector<4x15x16xf32>, vector<4x1x16xf32> -> vector<4x16x16xf32>
    %66 = arith.addf %62, %59 : vector<4x16x16xf32>
    %67 = arith.addf %66, %65 : vector<4x16x16xf32>
    %68 = arith.mulf %0, %1 : vector<4x16x16xf32>
    %69 = vector.extract_strided_slice %68 {offsets = [0, 0, 1], sizes = [4, 16, 1], strides = [1, 1, 1]} : vector<4x16x16xf32> to vector<4x16x1xf32>
    %70 = vector.extract_strided_slice %68 {offsets = [0, 0, 0], sizes = [4, 16, 15], strides = [1, 1, 1]} : vector<4x16x16xf32> to vector<4x16x15xf32>
    %71 = tpu.concatenate %69, %70 in 2 : vector<4x16x1xf32>, vector<4x16x15xf32> -> vector<4x16x16xf32>
    %72 = vector.extract_strided_slice %68 {offsets = [0, 0, 1], sizes = [4, 16, 15], strides = [1, 1, 1]} : vector<4x16x16xf32> to vector<4x16x15xf32>
    %73 = vector.extract_strided_slice %68 {offsets = [0, 0, 14], sizes = [4, 16, 1], strides = [1, 1, 1]} : vector<4x16x16xf32> to vector<4x16x1xf32>
    %74 = tpu.concatenate %72, %73 in 2 : vector<4x16x15xf32>, vector<4x16x1xf32> -> vector<4x16x16xf32>
    %75 = arith.addf %71, %68 : vector<4x16x16xf32>
    %76 = arith.addf %75, %74 : vector<4x16x16xf32>
    %77 = vector.extract_strided_slice %76 {offsets = [0, 1, 0], sizes = [4, 1, 16], strides = [1, 1, 1]} : vector<4x16x16xf32> to vector<4x1x16xf32>
    %78 = vector.extract_strided_slice %76 {offsets = [0, 0, 0], sizes = [4, 15, 16], strides = [1, 1, 1]} : vector<4x16x16xf32> to vector<4x15x16xf32>
    %79 = tpu.concatenate %77, %78 in 1 : vector<4x1x16xf32>, vector<4x15x16xf32> -> vector<4x16x16xf32>
    %80 = vector.extract_strided_slice %76 {offsets = [0, 1, 0], sizes = [4, 15, 16], strides = [1, 1, 1]} : vector<4x16x16xf32> to vector<4x15x16xf32>
    %81 = vector.extract_strided_slice %76 {offsets = [0, 14, 0], sizes = [4, 1, 16], strides = [1, 1, 1]} : vector<4x16x16xf32> to vector<4x1x16xf32>
    %82 = tpu.concatenate %80, %81 in 1 : vector<4x15x16xf32>, vector<4x1x16xf32> -> vector<4x16x16xf32>
    %83 = arith.addf %79, %76 : vector<4x16x16xf32>
    %84 = arith.addf %83, %82 : vector<4x16x16xf32>
    %85 = arith.mulf %17, %33 : vector<4x16x16xf32>
    %86 = arith.mulf %17, %17 : vector<4x16x16xf32>
    %87 = arith.mulf %33, %33 : vector<4x16x16xf32>
    %cst = arith.constant 2.000000e+00 : f32
    %88 = vector.broadcast %cst : f32 to vector<4x16x16xf32>
    %89 = arith.mulf %88, %85 : vector<4x16x16xf32>
    %cst_5 = arith.constant 8.100000e-03 : f32
    %90 = vector.broadcast %cst_5 : f32 to vector<4x16x16xf32>
    %91 = arith.addf %89, %90 : vector<4x16x16xf32>
    %cst_6 = arith.constant 1.800000e+01 : f32
    %92 = vector.broadcast %cst_6 : f32 to vector<4x16x16xf32>
    %93 = arith.mulf %92, %84 : vector<4x16x16xf32>
    %cst_7 = arith.constant 2.000000e+00 : f32
    %94 = vector.broadcast %cst_7 : f32 to vector<4x16x16xf32>
    %95 = arith.mulf %94, %85 : vector<4x16x16xf32>
    %96 = arith.subf %93, %95 : vector<4x16x16xf32>
    %cst_8 = arith.constant 7.290000e-02 : f32
    %97 = vector.broadcast %cst_8 : f32 to vector<4x16x16xf32>
    %98 = arith.addf %96, %97 : vector<4x16x16xf32>
    %99 = arith.mulf %91, %98 : vector<4x16x16xf32>
    %100 = arith.addf %86, %87 : vector<4x16x16xf32>
    %cst_9 = arith.constant 8.100000e-03 : f32
    %101 = vector.broadcast %cst_9 : f32 to vector<4x16x16xf32>
    %102 = arith.addf %100, %101 : vector<4x16x16xf32>
    %103 = arith.addf %50, %67 : vector<4x16x16xf32>
    %cst_10 = arith.constant 9.000000e+00 : f32
    %104 = vector.broadcast %cst_10 : f32 to vector<4x16x16xf32>
    %105 = arith.mulf %104, %103 : vector<4x16x16xf32>
    %106 = arith.subf %105, %86 : vector<4x16x16xf32>
    %107 = arith.subf %106, %87 : vector<4x16x16xf32>
    %cst_11 = arith.constant 7.290000e-02 : f32
    %108 = vector.broadcast %cst_11 : f32 to vector<4x16x16xf32>
    %109 = arith.addf %107, %108 : vector<4x16x16xf32>
    %110 = arith.mulf %102, %109 : vector<4x16x16xf32>
    %111 = tpu.reciprocal %110 {approx = true} : vector<4x16x16xf32> -> vector<4x16x16xf32>
    %112 = arith.mulf %99, %111 : vector<4x16x16xf32>
    %cst_12 = arith.constant 1.000000e+00 : f32
    %113 = vector.broadcast %cst_12 : f32 to vector<4x16x16xf32>
    %114 = arith.addf %112, %113 : vector<4x16x16xf32>
    %cst_13 = arith.constant 5.000000e-01 : f32
    %115 = vector.broadcast %cst_13 : f32 to vector<4x16x16xf32>
    %116 = arith.mulf %114, %115 : vector<4x16x16xf32>
    %cst_14 = arith.constant 0.000000e+00 : f32
    %cst_15 = arith.constant 1.000000e+00 : f32
    %117 = vector.broadcast %cst_14 : f32 to vector<4x16x16xf32>
    %118 = arith.maximumf %117, %116 : vector<4x16x16xf32>
    %119 = vector.broadcast %cst_15 : f32 to vector<4x16x16xf32>
    %120 = arith.minimumf %119, %118 : vector<4x16x16xf32>
    %c0_16 = arith.constant 0 : index
    %c0_17 = arith.constant 0 : index
    %c0_18 = arith.constant 0 : index
    %121 = vector.load %arg3[%c0_16, %c0_17, %c0_18] : memref<4x16x16xf32, #tpu.memory_space<vmem>>, vector<4x16x16xf32>
    tpu.vector_store %arg3[%c0_16, %c0_17, %c0_18], %120 {strides = array<i32>} : memref<4x16x16xf32, #tpu.memory_space<vmem>>, vector<4x16x16xf32>,
    return
  }
  func.func @transform_0(%arg0: i32) -> (i32, i32, i32) {
    %c0_i32 = arith.constant 0 : i32
    %c0_i32_0 = arith.constant 0 : i32
    %c0_i32_1 = arith.constant 0 : i32
    return %arg0, %c0_i32, %c0_i32_0 : i32, i32, i32
  }
  func.func @transform_1(%arg0: i32) -> (i32, i32, i32) {
    %c0_i32 = arith.constant 0 : i32
    %c0_i32_0 = arith.constant 0 : i32
    %c0_i32_1 = arith.constant 0 : i32
    return %arg0, %c0_i32, %c0_i32_0 : i32, i32, i32
  }
  func.func @transform_2(%arg0: i32) -> (i32, i32, i32) {
    %c0_i32 = arith.constant 0 : i32
    %c0_i32_0 = arith.constant 0 : i32
    %c0_i32_1 = arith.constant 0 : i32
    return %arg0, %c0_i32, %c0_i32_0 : i32, i32, i32
  }
}

</mosaic_0001>

<llo_original>
// kernel: ssim_loss.1
$region0: #{ssim_loss.1}
  #allocation0 [shape = 'u32[]', space=smem, size = 0x4, offset = 0x4, fixed_abs, tag = 'smem constant byte address 0x4 - core index']
  #allocation1 [shape = 'u32[144,128]{1,0:T(1,128)}', space=vmem, size = 0x12000, scoped, tag = 'internal scratch']
  %s0 = inlined_call_operand.hbm [shape: f32[8,16,16], index: 0, kind: input, shape index: {}]
  %s1 = inlined_call_operand.hbm [shape: f32[8,16,16], index: 1, kind: input, shape index: {}]
  %s2 = inlined_call_operand.hbm [shape: f32[8,16,16], index: 2, kind: output, shape index: {}]
  %s3 = sld [smem:[#allocation0]]
  $region49: #{ssim_loss.1} parent=0
    _
  %s5 = ssub.s32 1, %s3
  %s6 = scalar_select 0, %s5, %s3
  $region1: #{ssim_loss.1} parent=0
    #allocation2 [shape = 'u8[65536]{0}', space=vmem, size = 0x10000, scoped, tag = 'input window, operand 0']
    #allocation3 [shape = 's32[2]{0}', space=sflag, size = 0x8, scoped, tag = 'scoped memory for ssim_loss.1']
    #allocation4 [shape = 's32[2]{0}', space=sflag, size = 0x8, scoped, tag = 'scoped memory for ssim_loss.1']
    #allocation5 [shape = 'u8[65536]{0}', space=vmem, size = 0x10000, scoped, tag = 'input window, operand 1']
    #allocation6 [shape = 's32[2]{0}', space=sflag, size = 0x8, scoped, tag = 'scoped memory for ssim_loss.1']
    #allocation7 [shape = 'u8[65536]{0}', space=vmem, size = 0x10000, scoped, tag = 'output window, operand 0']
    %7 = vsyncpa [#allocation3], 0
    %s8 = scalar_lea.sflag [#allocation3], 1
    %9 = vsyncpa %s8, 0
    %10 = vsyncpa [#allocation6], 0
    %s11 = scalar_lea.sflag [#allocation6], 1
    %12 = vsyncpa %s11, 0
    %13 = vsyncpa [#allocation4], 0
    %s14 = scalar_lea.sflag [#allocation4], 1
    %15 = vsyncpa %s14, 0
    loop: start=0, step=1, limit=4
    $region2: #{ssim_loss.1} parent=1 // loop_pre_header
      _
    $region3: #{ssim_loss.1} parent=1 // loop_header
      %s17 = sphi 0, %s21
      %p18 = scmp.ge.s32.totalorder %s17, 4
      %s27 = sphi 0, %s29
      %s30 = sphi 0, %s27
      %s31 = sphi 0, %s30
      %s47 = sphi 0, %s31
      %s53 = sphi 0, %s55
      %s56 = sphi 0, %s53
      %s57 = sphi 0, %s56
      %s73 = sphi 0, %s57
      %s79 = sphi 0, %s81
      %s82 = sphi 0, %s79
      %s83 = sphi 0, %s82
      %s99 = sphi 0, %s83
    $region4: #{ssim_loss.1} parent=1 // loop_header_branch
      %20 = sbr.rel (%p18) target = $region8
    $region5: #{ssim_loss.1} parent=1 // loop_body
      %s22 = ssub.s32 %s17, 1
      %s23 = ssub.s32 %s17, 2
      %s24 = sadd.s32 %s17, 1
      %s25 = ssub.s32 %s17, %s24
      %p26 = scmp.eq.s32.totalorder %s25, 0
      %s28 = sadd.s32 %s27, 1
      %s29 = scalar_select %p26, %s27, %s28
      %p32 = pneg %p26
      %p33 = scmp.eq.s32.totalorder %s17, 1
      %p34 = por %p32, %p33
      %p35 = scmp.ne.s32.totalorder %s27, %s30
      %p36 = scmp.eq.s32.totalorder %s17, 0
      %p37 = por %p35, %p36
      %p38 = scmp.ne.s32.totalorder %s27, %s30
      %p39 = scmp.eq.s32.totalorder %s22, 1
      %p40 = por %p38, %p39
      %p41 = scmp.ne.s32.totalorder %s30, %s31
      %p42 = scmp.eq.s32.totalorder %s22, 0
      %p43 = por %p41, %p42
      %p44 = scmp.ne.s32.totalorder %s30, %s31
      %p45 = scmp.eq.s32.totalorder %s23, 1
      %p46 = por %p44, %p45
      %p48 = scmp.ne.s32.totalorder %s31, %s47
      %p49 = scmp.eq.s32.totalorder %s23, 0
      %p50 = por %p48, %p49
      %s51 = ssub.s32 %s17, %s24
      %p52 = scmp.eq.s32.totalorder %s51, 0
      %s54 = sadd.s32 %s53, 1
      %s55 = scalar_select %p52, %s53, %s54
      %p58 = pneg %p52
      %p59 = scmp.eq.s32.totalorder %s17, 1
      %p60 = por %p58, %p59
      %p61 = scmp.ne.s32.totalorder %s53, %s56
      %p62 = scmp.eq.s32.totalorder %s17, 0
      %p63 = por %p61, %p62
      %p64 = scmp.ne.s32.totalorder %s53, %s56
      %p65 = scmp.eq.s32.totalorder %s22, 1
      %p66 = por %p64, %p65
      %p67 = scmp.ne.s32.totalorder %s56, %s57
      %p68 = scmp.eq.s32.totalorder %s22, 0
      %p69 = por %p67, %p68
      %p70 = scmp.ne.s32.totalorder %s56, %s57
      %p71 = scmp.eq.s32.totalorder %s23, 1
      %p72 = por %p70, %p71
      %p74 = scmp.ne.s32.totalorder %s57, %s73
      %p75 = scmp.eq.s32.totalorder %s23, 0
      %p76 = por %p74, %p75
      %s77 = ssub.s32 %s17, %s24
      %p78 = scmp.eq.s32.totalorder %s77, 0
      %s80 = sadd.s32 %s79, 1
      %s81 = scalar_select %p78, %s79, %s80
      %p84 = pneg %p78
      %p85 = scmp.eq.s32.totalorder %s17, 1
      %p86 = por %p84, %p85
      %p87 = scmp.ne.s32.totalorder %s79, %s82
      %p88 = scmp.eq.s32.totalorder %s17, 0
      %p89 = por %p87, %p88
      %p90 = scmp.ne.s32.totalorder %s79, %s82
      %p91 = scmp.eq.s32.totalorder %s22, 1
      %p92 = por %p90, %p91
      %p93 = scmp.ne.s32.totalorder %s82, %s83
      %p94 = scmp.eq.s32.totalorder %s22, 0
      %p95 = por %p93, %p94
      %p96 = scmp.ne.s32.totalorder %s82, %s83
      %p97 = scmp.eq.s32.totalorder %s23, 1
      %p98 = por %p96, %p97
      %p100 = scmp.ne.s32.totalorder %s83, %s99
      %p101 = scmp.eq.s32.totalorder %s23, 0
      %p102 = por %p100, %p101
      %p103 = scmp.le.s32.totalorder 1, %s17
      %p104 = scmp.lt.s32.totalorder %s17, 3
      %p105 = pnand %p103, %p104
      %p106 = pneg %p105
      // Predicated region
      $region9: #{ssim_loss.1} parent=5 // pred_check
        _
      $region10: #{ssim_loss.1} parent=5 // pred_check_branch
        %108 = sbr.rel (%p105) target = $region12
      $region11: #{ssim_loss.1} parent=5 // pred_region
        %s109 = ssub.s32 %s17, 1
      $region12: #{ssim_loss.1} parent=5 // pred_fallthru
        _
      %p110 = scmp.lt.s32.totalorder %s17, 2
      // Predicated region
      $region13: #{ssim_loss.1} parent=5 // pred_check
        %p111 = pneg %p110
      $region14: #{ssim_loss.1} parent=5 // pred_check_branch
        %113 = sbr.rel (%p111) target = $region16
      $region15: #{ssim_loss.1} parent=5 // pred_region
        // Predicated region
        $region17: #{ssim_loss.1} parent=15 // pred_check
          %p114 = pneg %p37
        $region18: #{ssim_loss.1} parent=15 // pred_check_branch
          %116 = sbr.rel (%p114) target = $region20
        $region19: #{ssim_loss.1} parent=15 // pred_region
          %s117 = sand.u32 %s27, 1
          %s118 = scalar_lea.sflag [#allocation3], %s117
          %s119 = sand.u32 %s27, 1
          %s120 = smul.addr %s119, 64
          %s121 = scalar_lea.vmem [#allocation2], %s120
          %s122 = smul.u32 4, %s17
          %s124 = ssub.s32 1024, 1024
          %125 = vsyncadd %s118, %s124
          %s126 = smul.addr %s122, 2
          %s127 = smul.addr %s126, 128
          %s128 = scalar_lea.hbm %s0, %s127
          %s129 = sshll.u32 %s121, 4
          %s130 = int_to_ptr.vmem [resolvable:$true] %s129
          %135 = dma.hbm_to_vmem [thread:$0]  %s128, 1024, %s130, %s118, 128, 128, 8
        $region20: #{ssim_loss.1} parent=15 // pred_fallthru
          _
        // Predicated region
        $region21: #{ssim_loss.1} parent=15 // pred_check
          %p136 = pneg %p63
        $region22: #{ssim_loss.1} parent=15 // pred_check_branch
          %138 = sbr.rel (%p136) target = $region24
        $region23: #{ssim_loss.1} parent=15 // pred_region
          %s139 = sand.u32 %s53, 1
          %s140 = scalar_lea.sflag [#allocation6], %s139
          %s141 = sand.u32 %s53, 1
          %s142 = smul.addr %s141, 64
          %s143 = scalar_lea.vmem [#allocation5], %s142
          %s144 = smul.u32 4, %s17
          %s146 = ssub.s32 1024, 1024
          %147 = vsyncadd %s140, %s146
          %s148 = smul.addr %s144, 2
          %s149 = smul.addr %s148, 128
          %s150 = scalar_lea.hbm %s1, %s149
          %s151 = sshll.u32 %s143, 4
          %s152 = int_to_ptr.vmem [resolvable:$true] %s151
          %157 = dma.hbm_to_vmem [thread:$0]  %s150, 1024, %s152, %s140, 128, 128, 8
        $region24: #{ssim_loss.1} parent=15 // pred_fallthru
          _
      $region16: #{ssim_loss.1} parent=5 // pred_fallthru
        _
      %p158 = scmp.le.s32.totalorder 1, %s17
      %p159 = scmp.lt.s32.totalorder %s17, 3
      %p160 = pnand %p158, %p159
      %p161 = pneg %p160
      // Predicated region
      $region25: #{ssim_loss.1} parent=5 // pred_check
        _
      $region26: #{ssim_loss.1} parent=5 // pred_check_branch
        %163 = sbr.rel (%p160) target = $region28
      $region27: #{ssim_loss.1} parent=5 // pred_region
        %s164 = ssub.s32 %s17, 1
        %s165 = sand.u32 %s30, 1
        %s166 = scalar_lea.sflag [#allocation3], %s165
        %s167 = sand.u32 %s30, 1
        %s168 = smul.addr %s167, 64
        %s169 = scalar_lea.vmem [#allocation2], %s168
        // Predicated region
        $region29: #{ssim_loss.1} parent=27 // pred_check
          %p170 = pneg %p43
        $region30: #{ssim_loss.1} parent=27 // pred_check_branch
          %172 = sbr.rel (%p170) target = $region32
        $region31: #{ssim_loss.1} parent=27 // pred_region
          %173 = dma.done %s166, 1024
        $region32: #{ssim_loss.1} parent=27 // pred_fallthru
          _
        %s174 = sand.u32 %s56, 1
        %s175 = scalar_lea.sflag [#allocation6], %s174
        %s176 = sand.u32 %s56, 1
        %s177 = smul.addr %s176, 64
        %s178 = scalar_lea.vmem [#allocation5], %s177
        // Predicated region
        $region33: #{ssim_loss.1} parent=27 // pred_check
          %p179 = pneg %p69
        $region34: #{ssim_loss.1} parent=27 // pred_check_branch
          %181 = sbr.rel (%p179) target = $region36
        $region35: #{ssim_loss.1} parent=27 // pred_region
          %182 = dma.done %s175, 1024
        $region36: #{ssim_loss.1} parent=27 // pred_fallthru
          _
        %s183 = sand.u32 %s30, 1
        %s184 = scalar_lea.sflag [#allocation3], %s183
        %s185 = sand.u32 %s30, 1
        %s186 = smul.addr %s185, 64
        %s187 = scalar_lea.vmem [#allocation2], %s186
        %p188 = pneg %p43
        %p189 = pneg %p40
        %s190 = sand.u32 %s56, 1
        %s191 = scalar_lea.sflag [#allocation6], %s190
        %s192 = sand.u32 %s56, 1
        %s193 = smul.addr %s192, 64
        %s194 = scalar_lea.vmem [#allocation5], %s193
        %p195 = pneg %p69
        %p196 = pneg %p66
        %p197 = pneg %p95
        %p198 = pneg %p92
        %s199 = sand.u32 %s82, 1
        %s200 = scalar_lea.sflag [#allocation4], %s199
        %s201 = sand.u32 %s82, 1
        %s202 = smul.addr %s201, 64
        %s203 = scalar_lea.vmem [#allocation7], %s202
        %s204 = smul.u32 4, %s22
        %s205 = smul.u32 4, %s22
        %s206 = smul.u32 4, %s22
        %v207 = vld [vmem:[%s169] sm:$0xff]
        %v208 = vld [vmem:[%s169 + $0x8] sm:$0xff]
        %v209 = vld [vmem:[%s169 + $0x10] sm:$0xff]
        %v210 = vld [vmem:[%s169 + $0x18] sm:$0xff]
        %v211 = vld [vmem:[%s169 + $0x20] sm:$0xff]
        %v212 = vld [vmem:[%s169 + $0x28] sm:$0xff]
        %v213 = vld [vmem:[%s169 + $0x30] sm:$0xff]
        %v214 = vld [vmem:[%s169 + $0x38] sm:$0xff]
        %v215 = vld [vmem:[%s178] sm:$0xff]
        %v216 = vld [vmem:[%s178 + $0x8] sm:$0xff]
        %v217 = vld [vmem:[%s178 + $0x10] sm:$0xff]
        %v218 = vld [vmem:[%s178 + $0x18] sm:$0xff]
        %v219 = vld [vmem:[%s178 + $0x20] sm:$0xff]
        %v220 = vld [vmem:[%s178 + $0x28] sm:$0xff]
        %v221 = vld [vmem:[%s178 + $0x30] sm:$0xff]
        %v222 = vld [vmem:[%s178 + $0x38] sm:$0xff]
        %231 = vrot.lane.b32.xlu0 %v207, 127
        %v232 = vpop.permute.xlu0 %231
        %233 = vrot.lane.b32.xlu0 %v208, 127
        %v234 = vpop.permute.xlu0 %233
        %235 = vrot.lane.b32.xlu0 %v209, 127
        %v236 = vpop.permute.xlu0 %235
        %237 = vrot.lane.b32.xlu0 %v210, 127
        %v238 = vpop.permute.xlu0 %237
        %239 = vrot.lane.b32.xlu0 %v211, 127
        %v240 = vpop.permute.xlu0 %239
        %241 = vrot.lane.b32.xlu0 %v212, 127
        %v242 = vpop.permute.xlu0 %241
        %243 = vrot.lane.b32.xlu0 %v213, 127
        %v244 = vpop.permute.xlu0 %243
        %245 = vrot.lane.b32.xlu0 %v214, 127
        %v246 = vpop.permute.xlu0 %245
        %255 = vrot.lane.b32.xlu0 %v207, 1
        %v256 = vpop.permute.xlu0 %255
        %257 = vrot.lane.b32.xlu0 %v208, 1
        %v258 = vpop.permute.xlu0 %257
        %259 = vrot.lane.b32.xlu0 %v209, 1
        %v260 = vpop.permute.xlu0 %259
        %261 = vrot.lane.b32.xlu0 %v210, 1
        %v262 = vpop.permute.xlu0 %261
        %263 = vrot.lane.b32.xlu0 %v211, 1
        %v264 = vpop.permute.xlu0 %263
        %265 = vrot.lane.b32.xlu0 %v212, 1
        %v266 = vpop.permute.xlu0 %265
        %267 = vrot.lane.b32.xlu0 %v213, 1
        %v268 = vpop.permute.xlu0 %267
        %269 = vrot.lane.b32.xlu0 %v214, 1
        %v270 = vpop.permute.xlu0 %269
        %vm279 = vcmask 7168
        %v280 = vsel %vm279, %v232, %v256
        %v281 = vsel %vm279, %v234, %v258
        %v282 = vsel %vm279, %v236, %v260
        %v283 = vsel %vm279, %v238, %v262
        %v284 = vsel %vm279, %v240, %v264
        %v285 = vsel %vm279, %v242, %v266
        %v286 = vsel %vm279, %v244, %v268
        %v287 = vsel %vm279, %v246, %v270
        %vm288 = vcmask 121856
        %v289 = vsel %vm288, %v232, %v256
        %v290 = vsel %vm288, %v234, %v258
        %v291 = vsel %vm288, %v236, %v260
        %v292 = vsel %vm288, %v238, %v262
        %v293 = vsel %vm288, %v240, %v264
        %v294 = vsel %vm288, %v242, %v266
        %v295 = vsel %vm288, %v244, %v268
        %v296 = vsel %vm288, %v246, %v270
        %v297 = vadd.f32 %v280, %v207
        %v298 = vadd.f32 %v281, %v208
        %v299 = vadd.f32 %v282, %v209
        %v300 = vadd.f32 %v283, %v210
        %v301 = vadd.f32 %v284, %v211
        %v302 = vadd.f32 %v285, %v212
        %v303 = vadd.f32 %v286, %v213
        %v304 = vadd.f32 %v287, %v214
        %v305 = vadd.f32 %v297, %v289
        %v306 = vadd.f32 %v298, %v290
        %v307 = vadd.f32 %v299, %v291
        %v308 = vadd.f32 %v300, %v292
        %v309 = vadd.f32 %v301, %v293
        %v310 = vadd.f32 %v302, %v294
        %v311 = vadd.f32 %v303, %v295
        %v312 = vadd.f32 %v304, %v296
        %v317 = vrot.slane %v305, 1
        %v318 = vrot.slane %v307, 1
        %v319 = vrot.slane %v309, 1
        %v320 = vrot.slane %v311, 1
        %vm329 = vcmask 1040384
        %v330 = vrot.slane %v305, 7
        %v331 = vrot.slane %v306, 7
        %v332 = vsel %vm329, %v330, %v331
        %v333 = vrot.slane %v307, 7
        %v334 = vrot.slane %v308, 7
        %v335 = vsel %vm329, %v333, %v334
        %v336 = vrot.slane %v309, 7
        %v337 = vrot.slane %v310, 7
        %v338 = vsel %vm329, %v336, %v337
        %v339 = vrot.slane %v311, 7
        %v340 = vrot.slane %v312, 7
        %v341 = vsel %vm329, %v339, %v340
        %v350 = vsel %vm329, %v317, %v330
        %v351 = vsel %vm329, %v318, %v333
        %v352 = vsel %vm329, %v319, %v336
        %v353 = vsel %vm329, %v320, %v339
        %vm354 = vcmask 1046528
        %v355 = vrot.slane %v306, 1
        %v356 = vsel %vm354, %v317, %v355
        %v357 = vrot.slane %v308, 1
        %v358 = vsel %vm354, %v318, %v357
        %v359 = vrot.slane %v310, 1
        %v360 = vsel %vm354, %v319, %v359
        %v361 = vrot.slane %v312, 1
        %v362 = vsel %vm354, %v320, %v361
        %v375 = vsel %vm354, %v355, %v331
        %v376 = vsel %vm354, %v357, %v334
        %v377 = vsel %vm354, %v359, %v337
        %v378 = vsel %vm354, %v361, %v340
        %v379 = vadd.f32 %v350, %v305
        %v380 = vadd.f32 %v332, %v306
        %v381 = vadd.f32 %v351, %v307
        %v382 = vadd.f32 %v335, %v308
        %v383 = vadd.f32 %v352, %v309
        %v384 = vadd.f32 %v338, %v310
        %v385 = vadd.f32 %v353, %v311
        %v386 = vadd.f32 %v341, %v312
        %v387 = vadd.f32 %v379, %v356
        %v388 = vadd.f32 %v380, %v375
        %v389 = vadd.f32 %v381, %v358
        %v390 = vadd.f32 %v382, %v376
        %v391 = vadd.f32 %v383, %v360
        %v392 = vadd.f32 %v384, %v377
        %v393 = vadd.f32 %v385, %v362
        %v394 = vadd.f32 %v386, %v378
        %403 = vrot.lane.b32.xlu0 %v215, 127
        %v404 = vpop.permute.xlu0 %403
        %405 = vrot.lane.b32.xlu0 %v216, 127
        %v406 = vpop.permute.xlu0 %405
        %407 = vrot.lane.b32.xlu0 %v217, 127
        %v408 = vpop.permute.xlu0 %407
        %409 = vrot.lane.b32.xlu0 %v218, 127
        %v410 = vpop.permute.xlu0 %409
        %411 = vrot.lane.b32.xlu0 %v219, 127
        %v412 = vpop.permute.xlu0 %411
        %413 = vrot.lane.b32.xlu0 %v220, 127
        %v414 = vpop.permute.xlu0 %413
        %415 = vrot.lane.b32.xlu0 %v221, 127
        %v416 = vpop.permute.xlu0 %415
        %417 = vrot.lane.b32.xlu0 %v222, 127
        %v418 = vpop.permute.xlu0 %417
        %427 = vrot.lane.b32.xlu0 %v215, 1
        %v428 = vpop.permute.xlu0 %427
        %429 = vrot.lane.b32.xlu0 %v216, 1
        %v430 = vpop.permute.xlu0 %429
        %431 = vrot.lane.b32.xlu0 %v217, 1
        %v432 = vpop.permute.xlu0 %431
        %433 = vrot.lane.b32.xlu0 %v218, 1
        %v434 = vpop.permute.xlu0 %433
        %435 = vrot.lane.b32.xlu0 %v219, 1
        %v436 = vpop.permute.xlu0 %435
        %437 = vrot.lane.b32.xlu0 %v220, 1
        %v438 = vpop.permute.xlu0 %437
        %439 = vrot.lane.b32.xlu0 %v221, 1
        %v440 = vpop.permute.xlu0 %439
        %441 = vrot.lane.b32.xlu0 %v222, 1
        %v442 = vpop.permute.xlu0 %441
        %v451 = vsel %vm279, %v404, %v428
        %v452 = vsel %vm279, %v406, %v430
        %v453 = vsel %vm279, %v408, %v432
        %v454 = vsel %vm279, %v410, %v434
        %v455 = vsel %vm279, %v412, %v436
        %v456 = vsel %vm279, %v414, %v438
        %v457 = vsel %vm279, %v416, %v440
        %v458 = vsel %vm279, %v418, %v442
        %v459 = vsel %vm288, %v404, %v428
        %v460 = vsel %vm288, %v406, %v430
        %v461 = vsel %vm288, %v408, %v432
        %v462 = vsel %vm288, %v410, %v434
        %v463 = vsel %vm288, %v412, %v436
        %v464 = vsel %vm288, %v414, %v438
        %v465 = vsel %vm288, %v416, %v440
        %v466 = vsel %vm288, %v418, %v442
        %v467 = vadd.f32 %v451, %v215
        %v468 = vadd.f32 %v452, %v216
        %v469 = vadd.f32 %v453, %v217
        %v470 = vadd.f32 %v454, %v218
        %v471 = vadd.f32 %v455, %v219
        %v472 = vadd.f32 %v456, %v220
        %v473 = vadd.f32 %v457, %v221
        %v474 = vadd.f32 %v458, %v222
        %v475 = vadd.f32 %v467, %v459
        %v476 = vadd.f32 %v468, %v460
        %v477 = vadd.f32 %v469, %v461
        %v478 = vadd.f32 %v470, %v462
        %v479 = vadd.f32 %v471, %v463
        %v480 = vadd.f32 %v472, %v464
        %v481 = vadd.f32 %v473, %v465
        %v482 = vadd.f32 %v474, %v466
        %v487 = vrot.slane %v475, 1
        %v488 = vrot.slane %v477, 1
        %v489 = vrot.slane %v479, 1
        %v490 = vrot.slane %v481, 1
        %v499 = vrot.slane %v475, 7
        %v500 = vrot.slane %v476, 7
        %v501 = vsel %vm329, %v499, %v500
        %v502 = vrot.slane %v477, 7
        %v503 = vrot.slane %v478, 7
        %v504 = vsel %vm329, %v502, %v503
        %v505 = vrot.slane %v479, 7
        %v506 = vrot.slane %v480, 7
        %v507 = vsel %vm329, %v505, %v506
        %v508 = vrot.slane %v481, 7
        %v509 = vrot.slane %v482, 7
        %v510 = vsel %vm329, %v508, %v509
        %v519 = vsel %vm329, %v487, %v499
        %v520 = vsel %vm329, %v488, %v502
        %v521 = vsel %vm329, %v489, %v505
        %v522 = vsel %vm329, %v490, %v508
        %v523 = vrot.slane %v476, 1
        %v524 = vsel %vm354, %v487, %v523
        %v525 = vrot.slane %v478, 1
        %v526 = vsel %vm354, %v488, %v525
        %v527 = vrot.slane %v480, 1
        %v528 = vsel %vm354, %v489, %v527
        %v529 = vrot.slane %v482, 1
        %v530 = vsel %vm354, %v490, %v529
        %v543 = vsel %vm354, %v523, %v500
        %v544 = vsel %vm354, %v525, %v503
        %v545 = vsel %vm354, %v527, %v506
        %v546 = vsel %vm354, %v529, %v509
        %v547 = vadd.f32 %v519, %v475
        %v548 = vadd.f32 %v501, %v476
        %v549 = vadd.f32 %v520, %v477
        %v550 = vadd.f32 %v504, %v478
        %v551 = vadd.f32 %v521, %v479
        %v552 = vadd.f32 %v507, %v480
        %v553 = vadd.f32 %v522, %v481
        %v554 = vadd.f32 %v510, %v482
        %v555 = vadd.f32 %v547, %v524
        %v556 = vadd.f32 %v548, %v543
        %v557 = vadd.f32 %v549, %v526
        %v558 = vadd.f32 %v550, %v544
        %v559 = vadd.f32 %v551, %v528
        %v560 = vadd.f32 %v552, %v545
        %v561 = vadd.f32 %v553, %v530
        %v562 = vadd.f32 %v554, %v546
        %v563 = vmul.f32 %v207, %v207
        %v564 = vmul.f32 %v208, %v208
        %v565 = vmul.f32 %v209, %v209
        %v566 = vmul.f32 %v210, %v210
        %v567 = vmul.f32 %v211, %v211
        %v568 = vmul.f32 %v212, %v212
        %v569 = vmul.f32 %v213, %v213
        %v570 = vmul.f32 %v214, %v214
        %579 = vrot.lane.b32.xlu0 %v563, 127
        %v580 = vpop.permute.xlu0 %579
        %581 = vrot.lane.b32.xlu0 %v564, 127
        %v582 = vpop.permute.xlu0 %581
        %583 = vrot.lane.b32.xlu0 %v565, 127
        %v584 = vpop.permute.xlu0 %583
        %585 = vrot.lane.b32.xlu0 %v566, 127
        %v586 = vpop.permute.xlu0 %585
        %587 = vrot.lane.b32.xlu0 %v567, 127
        %v588 = vpop.permute.xlu0 %587
        %589 = vrot.lane.b32.xlu0 %v568, 127
        %v590 = vpop.permute.xlu0 %589
        %591 = vrot.lane.b32.xlu0 %v569, 127
        %v592 = vpop.permute.xlu0 %591
        %593 = vrot.lane.b32.xlu0 %v570, 127
        %v594 = vpop.permute.xlu0 %593
        %603 = vrot.lane.b32.xlu0 %v563, 1
        %v604 = vpop.permute.xlu0 %603
        %605 = vrot.lane.b32.xlu0 %v564, 1
        %v606 = vpop.permute.xlu0 %605
        %607 = vrot.lane.b32.xlu0 %v565, 1
        %v608 = vpop.permute.xlu0 %607
        %609 = vrot.lane.b32.xlu0 %v566, 1
        %v610 = vpop.permute.xlu0 %609
        %611 = vrot.lane.b32.xlu0 %v567, 1
        %v612 = vpop.permute.xlu0 %611
        %613 = vrot.lane.b32.xlu0 %v568, 1
        %v614 = vpop.permute.xlu0 %613
        %615 = vrot.lane.b32.xlu0 %v569, 1
        %v616 = vpop.permute.xlu0 %615
        %617 = vrot.lane.b32.xlu0 %v570, 1
        %v618 = vpop.permute.xlu0 %617
        %v627 = vsel %vm279, %v580, %v604
        %v628 = vsel %vm279, %v582, %v606
        %v629 = vsel %vm279, %v584, %v608
        %v630 = vsel %vm279, %v586, %v610
        %v631 = vsel %vm279, %v588, %v612
        %v632 = vsel %vm279, %v590, %v614
        %v633 = vsel %vm279, %v592, %v616
        %v634 = vsel %vm279, %v594, %v618
        %v635 = vsel %vm288, %v580, %v604
        %v636 = vsel %vm288, %v582, %v606
        %v637 = vsel %vm288, %v584, %v608
        %v638 = vsel %vm288, %v586, %v610
        %v639 = vsel %vm288, %v588, %v612
        %v640 = vsel %vm288, %v590, %v614
        %v641 = vsel %vm288, %v592, %v616
        %v642 = vsel %vm288, %v594, %v618
        %v643 = vadd.f32 %v627, %v563
        %v644 = vadd.f32 %v628, %v564
        %v645 = vadd.f32 %v629, %v565
        %v646 = vadd.f32 %v630, %v566
        %v647 = vadd.f32 %v631, %v567
        %v648 = vadd.f32 %v632, %v568
        %v649 = vadd.f32 %v633, %v569
        %v650 = vadd.f32 %v634, %v570
        %v651 = vadd.f32 %v643, %v635
        %v652 = vadd.f32 %v644, %v636
        %v653 = vadd.f32 %v645, %v637
        %v654 = vadd.f32 %v646, %v638
        %v655 = vadd.f32 %v647, %v639
        %v656 = vadd.f32 %v648, %v640
        %v657 = vadd.f32 %v649, %v641
        %v658 = vadd.f32 %v650, %v642
        %v663 = vrot.slane %v651, 1
        %v664 = vrot.slane %v653, 1
        %v665 = vrot.slane %v655, 1
        %v666 = vrot.slane %v657, 1
        %v675 = vrot.slane %v651, 7
        %v676 = vrot.slane %v652, 7
        %v677 = vsel %vm329, %v675, %v676
        %v678 = vrot.slane %v653, 7
        %v679 = vrot.slane %v654, 7
        %v680 = vsel %vm329, %v678, %v679
        %v681 = vrot.slane %v655, 7
        %v682 = vrot.slane %v656, 7
        %v683 = vsel %vm329, %v681, %v682
        %v684 = vrot.slane %v657, 7
        %v685 = vrot.slane %v658, 7
        %v686 = vsel %vm329, %v684, %v685
        %v695 = vsel %vm329, %v663, %v675
        %v696 = vsel %vm329, %v664, %v678
        %v697 = vsel %vm329, %v665, %v681
        %v698 = vsel %vm329, %v666, %v684
        %v699 = vrot.slane %v652, 1
        %v700 = vsel %vm354, %v663, %v699
        %v701 = vrot.slane %v654, 1
        %v702 = vsel %vm354, %v664, %v701
        %v703 = vrot.slane %v656, 1
        %v704 = vsel %vm354, %v665, %v703
        %v705 = vrot.slane %v658, 1
        %v706 = vsel %vm354, %v666, %v705
        %v719 = vsel %vm354, %v699, %v676
        %v720 = vsel %vm354, %v701, %v679
        %v721 = vsel %vm354, %v703, %v682
        %v722 = vsel %vm354, %v705, %v685
        %v723 = vadd.f32 %v695, %v651
        %v724 = vadd.f32 %v677, %v652
        %v725 = vadd.f32 %v696, %v653
        %v726 = vadd.f32 %v680, %v654
        %v727 = vadd.f32 %v697, %v655
        %v728 = vadd.f32 %v683, %v656
        %v729 = vadd.f32 %v698, %v657
        %v730 = vadd.f32 %v686, %v658
        %v731 = vadd.f32 %v723, %v700
        %v732 = vadd.f32 %v724, %v719
        %v733 = vadd.f32 %v725, %v702
        %v734 = vadd.f32 %v726, %v720
        %v735 = vadd.f32 %v727, %v704
        %v736 = vadd.f32 %v728, %v721
        %v737 = vadd.f32 %v729, %v706
        %v738 = vadd.f32 %v730, %v722
        %v739 = vmul.f32 %v215, %v215
        %v740 = vmul.f32 %v216, %v216
        %v741 = vmul.f32 %v217, %v217
        %v742 = vmul.f32 %v218, %v218
        %v743 = vmul.f32 %v219, %v219
        %v744 = vmul.f32 %v220, %v220
        %v745 = vmul.f32 %v221, %v221
        %v746 = vmul.f32 %v222, %v222
        %755 = vrot.lane.b32.xlu0 %v739, 127
        %v756 = vpop.permute.xlu0 %755
        %757 = vrot.lane.b32.xlu0 %v740, 127
        %v758 = vpop.permute.xlu0 %757
        %759 = vrot.lane.b32.xlu0 %v741, 127
        %v760 = vpop.permute.xlu0 %759
        %761 = vrot.lane.b32.xlu0 %v742, 127
        %v762 = vpop.permute.xlu0 %761
        %763 = vrot.lane.b32.xlu0 %v743, 127
        %v764 = vpop.permute.xlu0 %763
        %765 = vrot.lane.b32.xlu0 %v744, 127
        %v766 = vpop.permute.xlu0 %765
        %767 = vrot.lane.b32.xlu0 %v745, 127
        %v768 = vpop.permute.xlu0 %767
        %769 = vrot.lane.b32.xlu0 %v746, 127
        %v770 = vpop.permute.xlu0 %769
        %779 = vrot.lane.b32.xlu0 %v739, 1
        %v780 = vpop.permute.xlu0 %779
        %781 = vrot.lane.b32.xlu0 %v740, 1
        %v782 = vpop.permute.xlu0 %781
        %783 = vrot.lane.b32.xlu0 %v741, 1
        %v784 = vpop.permute.xlu0 %783
        %785 = vrot.lane.b32.xlu0 %v742, 1
        %v786 = vpop.permute.xlu0 %785
        %787 = vrot.lane.b32.xlu0 %v743, 1
        %v788 = vpop.permute.xlu0 %787
        %789 = vrot.lane.b32.xlu0 %v744, 1
        %v790 = vpop.permute.xlu0 %789
        %791 = vrot.lane.b32.xlu0 %v745, 1
        %v792 = vpop.permute.xlu0 %791
        %793 = vrot.lane.b32.xlu0 %v746, 1
        %v794 = vpop.permute.xlu0 %793
        %v803 = vsel %vm279, %v756, %v780
        %v804 = vsel %vm279, %v758, %v782
        %v805 = vsel %vm279, %v760, %v784
        %v806 = vsel %vm279, %v762, %v786
        %v807 = vsel %vm279, %v764, %v788
        %v808 = vsel %vm279, %v766, %v790
        %v809 = vsel %vm279, %v768, %v792
        %v810 = vsel %vm279, %v770, %v794
        %v811 = vsel %vm288, %v756, %v780
        %v812 = vsel %vm288, %v758, %v782
        %v813 = vsel %vm288, %v760, %v784
        %v814 = vsel %vm288, %v762, %v786
        %v815 = vsel %vm288, %v764, %v788
        %v816 = vsel %vm288, %v766, %v790
        %v817 = vsel %vm288, %v768, %v792
        %v818 = vsel %vm288, %v770, %v794
        %v819 = vadd.f32 %v803, %v739
        %v820 = vadd.f32 %v804, %v740
        %v821 = vadd.f32 %v805, %v741
        %v822 = vadd.f32 %v806, %v742
        %v823 = vadd.f32 %v807, %v743
        %v824 = vadd.f32 %v808, %v744
        %v825 = vadd.f32 %v809, %v745
        %v826 = vadd.f32 %v810, %v746
        %v827 = vadd.f32 %v819, %v811
        %v828 = vadd.f32 %v820, %v812
        %v829 = vadd.f32 %v821, %v813
        %v830 = vadd.f32 %v822, %v814
        %v831 = vadd.f32 %v823, %v815
        %v832 = vadd.f32 %v824, %v816
        %v833 = vadd.f32 %v825, %v817
        %v834 = vadd.f32 %v826, %v818
        %v839 = vrot.slane %v827, 1
        %v840 = vrot.slane %v829, 1
        %v841 = vrot.slane %v831, 1
        %v842 = vrot.slane %v833, 1
        %v851 = vrot.slane %v827, 7
        %v852 = vrot.slane %v828, 7
        %v853 = vsel %vm329, %v851, %v852
        %v854 = vrot.slane %v829, 7
        %v855 = vrot.slane %v830, 7
        %v856 = vsel %vm329, %v854, %v855
        %v857 = vrot.slane %v831, 7
        %v858 = vrot.slane %v832, 7
        %v859 = vsel %vm329, %v857, %v858
        %v860 = vrot.slane %v833, 7
        %v861 = vrot.slane %v834, 7
        %v862 = vsel %vm329, %v860, %v861
        %v871 = vsel %vm329, %v839, %v851
        %v872 = vsel %vm329, %v840, %v854
        %v873 = vsel %vm329, %v841, %v857
        %v874 = vsel %vm329, %v842, %v860
        %v875 = vrot.slane %v828, 1
        %v876 = vsel %vm354, %v839, %v875
        %v877 = vrot.slane %v830, 1
        %v878 = vsel %vm354, %v840, %v877
        %v879 = vrot.slane %v832, 1
        %v880 = vsel %vm354, %v841, %v879
        %v881 = vrot.slane %v834, 1
        %v882 = vsel %vm354, %v842, %v881
        %v895 = vsel %vm354, %v875, %v852
        %v896 = vsel %vm354, %v877, %v855
        %v897 = vsel %vm354, %v879, %v858
        %v898 = vsel %vm354, %v881, %v861
        %v899 = vadd.f32 %v871, %v827
        %v900 = vadd.f32 %v853, %v828
        %v901 = vadd.f32 %v872, %v829
        %v902 = vadd.f32 %v856, %v830
        %v903 = vadd.f32 %v873, %v831
        %v904 = vadd.f32 %v859, %v832
        %v905 = vadd.f32 %v874, %v833
        %v906 = vadd.f32 %v862, %v834
        %v907 = vadd.f32 %v899, %v876
        %v908 = vadd.f32 %v900, %v895
        %v909 = vadd.f32 %v901, %v878
        %v910 = vadd.f32 %v902, %v896
        %v911 = vadd.f32 %v903, %v880
        %v912 = vadd.f32 %v904, %v897
        %v913 = vadd.f32 %v905, %v882
        %v914 = vadd.f32 %v906, %v898
        %v915 = vmul.f32 %v207, %v215
        %v916 = vmul.f32 %v208, %v216
        %v917 = vmul.f32 %v209, %v217
        %v918 = vmul.f32 %v210, %v218
        %v919 = vmul.f32 %v211, %v219
        %v920 = vmul.f32 %v212, %v220
        %v921 = vmul.f32 %v213, %v221
        %v922 = vmul.f32 %v214, %v222
        %931 = vrot.lane.b32.xlu0 %v915, 127
        %v932 = vpop.permute.xlu0 %931
        %933 = vrot.lane.b32.xlu0 %v916, 127
        %v934 = vpop.permute.xlu0 %933
        %935 = vrot.lane.b32.xlu0 %v917, 127
        %v936 = vpop.permute.xlu0 %935
        %937 = vrot.lane.b32.xlu0 %v918, 127
        %v938 = vpop.permute.xlu0 %937
        %939 = vrot.lane.b32.xlu0 %v919, 127
        %v940 = vpop.permute.xlu0 %939
        %941 = vrot.lane.b32.xlu0 %v920, 127
        %v942 = vpop.permute.xlu0 %941
        %943 = vrot.lane.b32.xlu0 %v921, 127
        %v944 = vpop.permute.xlu0 %943
        %945 = vrot.lane.b32.xlu0 %v922, 127
        %v946 = vpop.permute.xlu0 %945
        %955 = vrot.lane.b32.xlu0 %v915, 1
        %v956 = vpop.permute.xlu0 %955
        %957 = vrot.lane.b32.xlu0 %v916, 1
        %v958 = vpop.permute.xlu0 %957
        %959 = vrot.lane.b32.xlu0 %v917, 1
        %v960 = vpop.permute.xlu0 %959
        %961 = vrot.lane.b32.xlu0 %v918, 1
        %v962 = vpop.permute.xlu0 %961
        %963 = vrot.lane.b32.xlu0 %v919, 1
        %v964 = vpop.permute.xlu0 %963
        %965 = vrot.lane.b32.xlu0 %v920, 1
        %v966 = vpop.permute.xlu0 %965
        %967 = vrot.lane.b32.xlu0 %v921, 1
        %v968 = vpop.permute.xlu0 %967
        %969 = vrot.lane.b32.xlu0 %v922, 1
        %v970 = vpop.permute.xlu0 %969
        %v979 = vsel %vm279, %v932, %v956
        %v980 = vsel %vm279, %v934, %v958
        %v981 = vsel %vm279, %v936, %v960
        %v982 = vsel %vm279, %v938, %v962
        %v983 = vsel %vm279, %v940, %v964
        %v984 = vsel %vm279, %v942, %v966
        %v985 = vsel %vm279, %v944, %v968
        %v986 = vsel %vm279, %v946, %v970
        %v987 = vsel %vm288, %v932, %v956
        %v988 = vsel %vm288, %v934, %v958
        %v989 = vsel %vm288, %v936, %v960
        %v990 = vsel %vm288, %v938, %v962
        %v991 = vsel %vm288, %v940, %v964
        %v992 = vsel %vm288, %v942, %v966
        %v993 = vsel %vm288, %v944, %v968
        %v994 = vsel %vm288, %v946, %v970
        %v995 = vadd.f32 %v979, %v915
        %v996 = vadd.f32 %v980, %v916
        %v997 = vadd.f32 %v981, %v917
        %v998 = vadd.f32 %v982, %v918
        %v999 = vadd.f32 %v983, %v919
        %v1000 = vadd.f32 %v984, %v920
        %v1001 = vadd.f32 %v985, %v921
        %v1002 = vadd.f32 %v986, %v922
        %v1003 = vadd.f32 %v995, %v987
        %v1004 = vadd.f32 %v996, %v988
        %v1005 = vadd.f32 %v997, %v989
        %v1006 = vadd.f32 %v998, %v990
        %v1007 = vadd.f32 %v999, %v991
        %v1008 = vadd.f32 %v1000, %v992
        %v1009 = vadd.f32 %v1001, %v993
        %v1010 = vadd.f32 %v1002, %v994
        %v1015 = vrot.slane %v1003, 1
        %v1016 = vrot.slane %v1005, 1
        %v1017 = vrot.slane %v1007, 1
        %v1018 = vrot.slane %v1009, 1
        %v1027 = vrot.slane %v1003, 7
        %v1028 = vrot.slane %v1004, 7
        %v1029 = vsel %vm329, %v1027, %v1028
        %v1030 = vrot.slane %v1005, 7
        %v1031 = vrot.slane %v1006, 7
        %v1032 = vsel %vm329, %v1030, %v1031
        %v1033 = vrot.slane %v1007, 7
        %v1034 = vrot.slane %v1008, 7
        %v1035 = vsel %vm329, %v1033, %v1034
        %v1036 = vrot.slane %v1009, 7
        %v1037 = vrot.slane %v1010, 7
        %v1038 = vsel %vm329, %v1036, %v1037
        %v1047 = vsel %vm329, %v1015, %v1027
        %v1048 = vsel %vm329, %v1016, %v1030
        %v1049 = vsel %vm329, %v1017, %v1033
        %v1050 = vsel %vm329, %v1018, %v1036
        %v1051 = vrot.slane %v1004, 1
        %v1052 = vsel %vm354, %v1015, %v1051
        %v1053 = vrot.slane %v1006, 1
        %v1054 = vsel %vm354, %v1016, %v1053
        %v1055 = vrot.slane %v1008, 1
        %v1056 = vsel %vm354, %v1017, %v1055
        %v1057 = vrot.slane %v1010, 1
        %v1058 = vsel %vm354, %v1018, %v1057
        %v1071 = vsel %vm354, %v1051, %v1028
        %v1072 = vsel %vm354, %v1053, %v1031
        %v1073 = vsel %vm354, %v1055, %v1034
        %v1074 = vsel %vm354, %v1057, %v1037
        %v1075 = vadd.f32 %v1047, %v1003
        %v1076 = vadd.f32 %v1029, %v1004
        %v1077 = vadd.f32 %v1048, %v1005
        %v1078 = vadd.f32 %v1032, %v1006
        %v1079 = vadd.f32 %v1049, %v1007
        %v1080 = vadd.f32 %v1035, %v1008
        %v1081 = vadd.f32 %v1050, %v1009
        %v1082 = vadd.f32 %v1038, %v1010
        %v1083 = vadd.f32 %v1075, %v1052
        %v1084 = vadd.f32 %v1076, %v1071
        %v1085 = vadd.f32 %v1077, %v1054
        %v1086 = vadd.f32 %v1078, %v1072
        %v1087 = vadd.f32 %v1079, %v1056
        %v1088 = vadd.f32 %v1080, %v1073
        %v1089 = vadd.f32 %v1081, %v1058
        %v1090 = vadd.f32 %v1082, %v1074
        %v1091 = vmul.f32 %v387, %v555
        %v1092 = vmul.f32 %v388, %v556
        %v1093 = vmul.f32 %v389, %v557
        %v1094 = vmul.f32 %v390, %v558
        %v1095 = vmul.f32 %v391, %v559
        %v1096 = vmul.f32 %v392, %v560
        %v1097 = vmul.f32 %v393, %v561
        %v1098 = vmul.f32 %v394, %v562
        %v1099 = vmul.f32 %v387, %v387
        %v1100 = vmul.f32 %v388, %v388
        %v1101 = vmul.f32 %v389, %v389
        %v1102 = vmul.f32 %v390, %v390
        %v1103 = vmul.f32 %v391, %v391
        %v1104 = vmul.f32 %v392, %v392
        %v1105 = vmul.f32 %v393, %v393
        %v1106 = vmul.f32 %v394, %v394
        %v1107 = vmul.f32 %v555, %v555
        %v1108 = vmul.f32 %v556, %v556
        %v1109 = vmul.f32 %v557, %v557
        %v1110 = vmul.f32 %v558, %v558
        %v1111 = vmul.f32 %v559, %v559
        %v1112 = vmul.f32 %v560, %v560
        %v1113 = vmul.f32 %v561, %v561
        %v1114 = vmul.f32 %v562, %v562
        %v1115 = vmul.f32 %v1091, 2.0
        %v1116 = vmul.f32 %v1092, 2.0
        %v1117 = vmul.f32 %v1093, 2.0
        %v1118 = vmul.f32 %v1094, 2.0
        %v1119 = vmul.f32 %v1095, 2.0
        %v1120 = vmul.f32 %v1096, 2.0
        %v1121 = vmul.f32 %v1097, 2.0
        %v1122 = vmul.f32 %v1098, 2.0
        %v1123 = vadd.f32 %v1115, 0.0081
        %v1124 = vadd.f32 %v1116, 0.0081
        %v1125 = vadd.f32 %v1117, 0.0081
        %v1126 = vadd.f32 %v1118, 0.0081
        %v1127 = vadd.f32 %v1119, 0.0081
        %v1128 = vadd.f32 %v1120, 0.0081
        %v1129 = vadd.f32 %v1121, 0.0081
        %v1130 = vadd.f32 %v1122, 0.0081
        %v1131 = vmul.f32 %v1083, 18.0
        %v1132 = vmul.f32 %v1084, 18.0
        %v1133 = vmul.f32 %v1085, 18.0
        %v1134 = vmul.f32 %v1086, 18.0
        %v1135 = vmul.f32 %v1087, 18.0
        %v1136 = vmul.f32 %v1088, 18.0
        %v1137 = vmul.f32 %v1089, 18.0
        %v1138 = vmul.f32 %v1090, 18.0
        %v1139 = vsub.f32 %v1131, %v1115
        %v1140 = vsub.f32 %v1132, %v1116
        %v1141 = vsub.f32 %v1133, %v1117
        %v1142 = vsub.f32 %v1134, %v1118
        %v1143 = vsub.f32 %v1135, %v1119
        %v1144 = vsub.f32 %v1136, %v1120
        %v1145 = vsub.f32 %v1137, %v1121
        %v1146 = vsub.f32 %v1138, %v1122
        %v1147 = vadd.f32 %v1139, 0.0729
        %v1148 = vadd.f32 %v1140, 0.0729
        %v1149 = vadd.f32 %v1141, 0.0729
        %v1150 = vadd.f32 %v1142, 0.0729
        %v1151 = vadd.f32 %v1143, 0.0729
        %v1152 = vadd.f32 %v1144, 0.0729
        %v1153 = vadd.f32 %v1145, 0.0729
        %v1154 = vadd.f32 %v1146, 0.0729
        %v1155 = vmul.f32 %v1123, %v1147
        %v1156 = vmul.f32 %v1124, %v1148
        %v1157 = vmul.f32 %v1125, %v1149
        %v1158 = vmul.f32 %v1126, %v1150
        %v1159 = vmul.f32 %v1127, %v1151
        %v1160 = vmul.f32 %v1128, %v1152
        %v1161 = vmul.f32 %v1129, %v1153
        %v1162 = vmul.f32 %v1130, %v1154
        %v1163 = vadd.f32 %v1099, %v1107
        %v1164 = vadd.f32 %v1100, %v1108
        %v1165 = vadd.f32 %v1101, %v1109
        %v1166 = vadd.f32 %v1102, %v1110
        %v1167 = vadd.f32 %v1103, %v1111
        %v1168 = vadd.f32 %v1104, %v1112
        %v1169 = vadd.f32 %v1105, %v1113
        %v1170 = vadd.f32 %v1106, %v1114
        %v1171 = vadd.f32 %v1163, 0.0081
        %v1172 = vadd.f32 %v1164, 0.0081
        %v1173 = vadd.f32 %v1165, 0.0081
        %v1174 = vadd.f32 %v1166, 0.0081
        %v1175 = vadd.f32 %v1167, 0.0081
        %v1176 = vadd.f32 %v1168, 0.0081
        %v1177 = vadd.f32 %v1169, 0.0081
        %v1178 = vadd.f32 %v1170, 0.0081
        %v1179 = vadd.f32 %v731, %v907
        %v1180 = vadd.f32 %v732, %v908
        %v1181 = vadd.f32 %v733, %v909
        %v1182 = vadd.f32 %v734, %v910
        %v1183 = vadd.f32 %v735, %v911
        %v1184 = vadd.f32 %v736, %v912
        %v1185 = vadd.f32 %v737, %v913
        %v1186 = vadd.f32 %v738, %v914
        %v1187 = vmul.f32 %v1179, 9.0
        %v1188 = vmul.f32 %v1180, 9.0
        %v1189 = vmul.f32 %v1181, 9.0
        %v1190 = vmul.f32 %v1182, 9.0
        %v1191 = vmul.f32 %v1183, 9.0
        %v1192 = vmul.f32 %v1184, 9.0
        %v1193 = vmul.f32 %v1185, 9.0
        %v1194 = vmul.f32 %v1186, 9.0
        %v1195 = vsub.f32 %v1187, %v1099
        %v1196 = vsub.f32 %v1188, %v1100
        %v1197 = vsub.f32 %v1189, %v1101
        %v1198 = vsub.f32 %v1190, %v1102
        %v1199 = vsub.f32 %v1191, %v1103
        %v1200 = vsub.f32 %v1192, %v1104
        %v1201 = vsub.f32 %v1193, %v1105
        %v1202 = vsub.f32 %v1194, %v1106
        %v1203 = vsub.f32 %v1195, %v1107
        %v1204 = vsub.f32 %v1196, %v1108
        %v1205 = vsub.f32 %v1197, %v1109
        %v1206 = vsub.f32 %v1198, %v1110
        %v1207 = vsub.f32 %v1199, %v1111
        %v1208 = vsub.f32 %v1200, %v1112
        %v1209 = vsub.f32 %v1201, %v1113
        %v1210 = vsub.f32 %v1202, %v1114
        %v1211 = vadd.f32 %v1203, 0.0729
        %v1212 = vadd.f32 %v1204, 0.0729
        %v1213 = vadd.f32 %v1205, 0.0729
        %v1214 = vadd.f32 %v1206, 0.0729
        %v1215 = vadd.f32 %v1207, 0.0729
        %v1216 = vadd.f32 %v1208, 0.0729
        %v1217 = vadd.f32 %v1209, 0.0729
        %v1218 = vadd.f32 %v1210, 0.0729
        %v1219 = vmul.f32 %v1171, %v1211
        %v1220 = vmul.f32 %v1172, %v1212
        %v1221 = vmul.f32 %v1173, %v1213
        %v1222 = vmul.f32 %v1174, %v1214
        %v1223 = vmul.f32 %v1175, %v1215
        %v1224 = vmul.f32 %v1176, %v1216
        %v1225 = vmul.f32 %v1177, %v1217
        %v1226 = vmul.f32 %v1178, %v1218
        %v1227 = vrcp.pop %v1219
        %v1228 = vrcp.pop %v1220
        %v1229 = vrcp.pop %v1221
        %v1230 = vrcp.pop %v1222
        %v1231 = vrcp.pop %v1223
        %v1232 = vrcp.pop %v1224
        %v1233 = vrcp.pop %v1225
        %v1234 = vrcp.pop %v1226
        %v1235 = vmul.f32 %v1155, %v1227
        %v1236 = vmul.f32 %v1156, %v1228
        %v1237 = vmul.f32 %v1157, %v1229
        %v1238 = vmul.f32 %v1158, %v1230
        %v1239 = vmul.f32 %v1159, %v1231
        %v1240 = vmul.f32 %v1160, %v1232
        %v1241 = vmul.f32 %v1161, %v1233
        %v1242 = vmul.f32 %v1162, %v1234
        %v1243 = vadd.f32 %v1235, 1.0
        %v1244 = vadd.f32 %v1236, 1.0
        %v1245 = vadd.f32 %v1237, 1.0
        %v1246 = vadd.f32 %v1238, 1.0
        %v1247 = vadd.f32 %v1239, 1.0
        %v1248 = vadd.f32 %v1240, 1.0
        %v1249 = vadd.f32 %v1241, 1.0
        %v1250 = vadd.f32 %v1242, 1.0
        %v1251 = vmul.f32 %v1243, 0.5
        %v1252 = vmul.f32 %v1244, 0.5
        %v1253 = vmul.f32 %v1245, 0.5
        %v1254 = vmul.f32 %v1246, 0.5
        %v1255 = vmul.f32 %v1247, 0.5
        %v1256 = vmul.f32 %v1248, 0.5
        %v1257 = vmul.f32 %v1249, 0.5
        %v1258 = vmul.f32 %v1250, 0.5
        %v1259 = vmax.f32 %v1251, 0.0
        %v1260 = vmax.f32 %v1252, 0.0
        %v1261 = vmax.f32 %v1253, 0.0
        %v1262 = vmax.f32 %v1254, 0.0
        %v1263 = vmax.f32 %v1255, 0.0
        %v1264 = vmax.f32 %v1256, 0.0
        %v1265 = vmax.f32 %v1257, 0.0
        %v1266 = vmax.f32 %v1258, 0.0
        %v1267 = vmin.f32 %v1259, 1.0
        %v1268 = vmin.f32 %v1260, 1.0
        %v1269 = vmin.f32 %v1261, 1.0
        %v1270 = vmin.f32 %v1262, 1.0
        %v1271 = vmin.f32 %v1263, 1.0
        %v1272 = vmin.f32 %v1264, 1.0
        %v1273 = vmin.f32 %v1265, 1.0
        %v1274 = vmin.f32 %v1266, 1.0
        %vm1275 = vcmask 130048
        %1276 = vst.msk [vmem:[%s203] sm:$0xff] %vm1275, %v1267
        %1277 = vst.msk [vmem:[%s203 + $0x8] sm:$0xff] %vm1275, %v1268
        %1278 = vst.msk [vmem:[%s203 + $0x10] sm:$0xff] %vm1275, %v1269
        %1279 = vst.msk [vmem:[%s203 + $0x18] sm:$0xff] %vm1275, %v1270
        %1280 = vst.msk [vmem:[%s203 + $0x20] sm:$0xff] %vm1275, %v1271
        %1281 = vst.msk [vmem:[%s203 + $0x28] sm:$0xff] %vm1275, %v1272
        %1282 = vst.msk [vmem:[%s203 + $0x30] sm:$0xff] %vm1275, %v1273
        %1283 = vst.msk [vmem:[%s203 + $0x38] sm:$0xff] %vm1275, %v1274
        %s1284 = sand.u32 %s82, 1
        %s1285 = scalar_lea.sflag [#allocation4], %s1284
        %s1286 = sand.u32 %s82, 1
        %s1287 = smul.addr %s1286, 64
        %s1288 = scalar_lea.vmem [#allocation7], %s1287
        // Predicated region
        $region37: #{ssim_loss.1} parent=27 // pred_check
          %p1289 = pneg %p92
        $region38: #{ssim_loss.1} parent=27 // pred_check_branch
          %1291 = sbr.rel (%p1289) target = $region40
        $region39: #{ssim_loss.1} parent=27 // pred_region
          %s1292 = smul.u32 4, %s22
          %s1294 = ssub.s32 1024, 1024
          %1295 = vsyncadd %s1285, %s1294
          %s1296 = smul.addr %s1292, 2
          %s1297 = smul.addr %s1296, 128
          %s1298 = scalar_lea.hbm %s2, %s1297
          %s1299 = sshll.u32 %s1288, 4
          %s1300 = int_to_ptr.vmem [resolvable:$true] %s1299
          %1305 = dma.vmem_to_hbm [thread:$0]  %s1300, 1024, %s1298, %s1285, 128, 128, 8
        $region40: #{ssim_loss.1} parent=27 // pred_fallthru
          _
      $region28: #{ssim_loss.1} parent=5 // pred_fallthru
        _
      %p1306 = scmp.le.s32.totalorder 2, %s17
      // Predicated region
      $region41: #{ssim_loss.1} parent=5 // pred_check
        %p1307 = pneg %p1306
      $region42: #{ssim_loss.1} parent=5 // pred_check_branch
        %1309 = sbr.rel (%p1307) target = $region44
      $region43: #{ssim_loss.1} parent=5 // pred_region
        %s1310 = ssub.s32 %s17, 2
        // Predicated region
        $region45: #{ssim_loss.1} parent=43 // pred_check
          %p1311 = pneg %p98
        $region46: #{ssim_loss.1} parent=43 // pred_check_branch
          %1313 = sbr.rel (%p1311) target = $region48
        $region47: #{ssim_loss.1} parent=43 // pred_region
          %s1314 = sand.u32 %s83, 1
          %s1315 = scalar_lea.sflag [#allocation4], %s1314
          %s1316 = sand.u32 %s83, 1
          %s1317 = smul.addr %s1316, 64
          %s1318 = scalar_lea.vmem [#allocation7], %s1317
          %1319 = dma.done %s1315, 1024
        $region48: #{ssim_loss.1} parent=43 // pred_fallthru
          _
      $region44: #{ssim_loss.1} parent=5 // pred_fallthru
        _
    $region6: #{ssim_loss.1} parent=1 // loop_footer
      %s21 = sadd.s32 1, %s17
    $region7: #{ssim_loss.1} parent=1 // loop_footer_branch
      %16 = sbr.rel target = $region3
    $region8: #{ssim_loss.1} parent=1 // loop_exit
      _
    %1320 = vsyncpa [#allocation3], 1
    %s1321 = scalar_lea.sflag [#allocation3], 1
    %1322 = vsyncpa %s1321, 1
    %1323 = vsyncpa [#allocation6], 1
    %s1324 = scalar_lea.sflag [#allocation6], 1
    %1325 = vsyncpa %s1324, 1
    %1326 = vsyncpa [#allocation4], 1
    %s1327 = scalar_lea.sflag [#allocation4], 1
    %1328 = vsyncpa %s1327, 1

</llo_original>
